<compile_context>
chip_gen: v7x
topology: tpu7x:2x2x1
jax: 0.10.0
libtpu: 0.0.40
codegen_flags: <defaults>
</compile_context>

<pallas_src>
import math

import jax
import jax.numpy as jnp
from jax import lax
from jax.experimental import pallas as pl
from jax.experimental.pallas import tpu as pltpu

_SUB = 8                                 # sublanes per vreg
_LANE = 128                              # lanes per vreg
_TARGET_BLOCK_BYTES = 4 * 1024 * 1024    # per-input, per-buffer VMEM budget


def _mse_partial_kernel(pred_ref, targ_ref, out_ref):
    """Writes the (8, W) partial sum of (pred - targ)^2 for this row tile."""
    tm, w = pred_ref.shape
    groups = tm // _SUB

    def body(g, acc):
        off = pl.multiple_of(g * _SUB, _SUB)
        p = pred_ref[pl.ds(off, _SUB), :].astype(jnp.float32)
        t = targ_ref[pl.ds(off, _SUB), :].astype(jnp.float32)
        d = p - t
        return acc + d * d

    out_ref[...] = lax.fori_loop(
        0, groups, body, jnp.zeros((_SUB, w), jnp.float32))


def _plan_layout(total, itemsize):
    """Pick (W, rows, rows_per_tile, pad) for a sublane-dense (rows, W) slab."""
    # Lane width: as wide as possible (big contiguous DMAs) without forcing a
    # tiny input to pad out to a huge slab.
    w = 2048
    while w > _LANE and total < _SUB * w:
        w //= 2
    rows = -(-total // w)
    rows = ((rows + _SUB - 1) // _SUB) * _SUB                    # multiple of 8
    rows_cap = max(_SUB,
                   (_TARGET_BLOCK_BYTES // (w * itemsize)) // _SUB * _SUB)
    if rows <= rows_cap:
        tm = rows
    else:
        tm = _SUB
        for cand in range(rows_cap, _SUB - 1, -_SUB):
            if rows % cand == 0:                                 # exact tiling
                tm = cand
                break
    return w, rows, tm, rows * w - total


def mse_loss(predict, target):
    """sum((predict - target)^2) / predict.shape[0], computed in Pallas."""
    assert predict.shape == target.shape
    n = predict.shape[0]
    total = math.prod(predict.shape)
    itemsize = max(jnp.dtype(predict.dtype).itemsize,
                   jnp.dtype(target.dtype).itemsize)

    w, rows, tm, pad = _plan_layout(total, itemsize)

    pred_flat = predict.reshape(-1)
    targ_flat = target.reshape(-1)
    if pad:
        # Irregular-size fallback; zero padding contributes 0 to the sum.
        pred_flat = jnp.pad(pred_flat, (0, pad))
        targ_flat = jnp.pad(targ_flat, (0, pad))
    pred2d = pred_flat.reshape(rows, w)
    targ2d = targ_flat.reshape(rows, w)

    num_tiles = rows // tm

    partials = pl.pallas_call(
        _mse_partial_kernel,
        out_shape=jax.ShapeDtypeStruct((num_tiles * _SUB, w), jnp.float32),
        grid_spec=pltpu.PrefetchScalarGridSpec(
            num_scalar_prefetch=0,
            grid=(num_tiles,),
            in_specs=[
                pl.BlockSpec((tm, w), lambda i: (i, 0)),
                pl.BlockSpec((tm, w), lambda i: (i, 0)),
            ],
            out_specs=pl.BlockSpec((_SUB, w), lambda i: (i, 0)),
        ),
        compiler_params=pltpu.CompilerParams(
            # Independent tiles -> megacore sharding on v7x, harmless elsewhere.
            dimension_semantics=("parallel",),
            # 2 inputs x 2 buffers x ~4 MiB blocks (+ small output/partials).
            vmem_limit_bytes=48 * 1024 * 1024,
        ),
    )(pred2d, targ2d)

    # Tiny final reduction + the module's /batch-size normalization.
    return jnp.sum(partials) / jnp.float32(n)


def mse_loss_ref(predict, target):
    """Pure-JAX reference matching the PyTorch module semantics."""
    err = predict.astype(jnp.float32) - target.astype(jnp.float32)
    return jnp.sum(err * err) / predict.shape[0]


if __name__ == "__main__":
    key = jax.random.PRNGKey(0)
    k_pred, k_targ = jax.random.split(key)

    # NCHW inputs, as a PyTorch model producing predictions would emit.
    x_shape = (2, 4, 16, 16)
    predict = jax.random.normal(k_pred, x_shape, dtype=jnp.float32)
    target = jax.random.normal(k_targ, x_shape, dtype=jnp.float32)

    loss = mse_loss(predict, target)
    jax.block_until_ready(loss)

    ref = mse_loss_ref(predict, target)
    assert jnp.allclose(loss, ref, rtol=1e-5, atol=1e-5), (loss, ref)

    print("KERNEL_OK")
</pallas_src>

<mosaic_0001>
module attributes {stable_mosaic.version = 11 : i64} {
  func.func @_mse_partial_kernel(%arg0: i32, %arg1: memref<8x256xf32, #tpu.memory_space<vmem>>, %arg2: memref<8x256xf32, #tpu.memory_space<vmem>>, %arg3: memref<8x256xf32, #tpu.memory_space<vmem>>) attributes {dimension_semantics = [#tpu.dimension_semantics<parallel>], iteration_bounds = array<i64: 1>, scalar_prefetch = 0 : i64, scratch_operands = 0 : i64, tpu.core_type = #tpu.core_type<tc>, window_params = [{transform_indices = @transform_0, window_bounds = array<i64: 8, 256>}, {transform_indices = @transform_1, window_bounds = array<i64: 8, 256>}, {transform_indices = @transform_2, window_bounds = array<i64: 8, 256>}]} {
    %cst = arith.constant 0.000000e+00 : f32
    %0 = vector.broadcast %cst : f32 to vector<8x256xf32>
    %c0_i32 = arith.constant 0 : i32
    %c8_i32 = arith.constant 8 : i32
    %1 = arith.muli %c0_i32, %c8_i32 : i32
    %2 = tpu.assume_multiple %1, 8 : i32
    %3 = arith.index_cast %2 : i32 to index
    %c0 = arith.constant 0 : index
    %4 = vector.load %arg1[%3, %c0] : memref<8x256xf32, #tpu.memory_space<vmem>>, vector<8x256xf32>
    %5 = arith.index_cast %2 : i32 to index
    %c0_0 = arith.constant 0 : index
    %6 = vector.load %arg2[%5, %c0_0] : memref<8x256xf32, #tpu.memory_space<vmem>>, vector<8x256xf32>
    %7 = arith.subf %4, %6 : vector<8x256xf32>
    %8 = arith.mulf %7, %7 : vector<8x256xf32>
    %9 = arith.addf %0, %8 : vector<8x256xf32>
    %c1_i32 = arith.constant 1 : i32
    %c0_1 = arith.constant 0 : index
    %c0_2 = arith.constant 0 : index
    %10 = vector.load %arg3[%c0_1, %c0_2] : memref<8x256xf32, #tpu.memory_space<vmem>>, vector<8x256xf32>
    tpu.vector_store %arg3[%c0_1, %c0_2], %9 {strides = array<i32>} : memref<8x256xf32, #tpu.memory_space<vmem>>, vector<8x256xf32>,
    return
  }
  func.func @transform_0(%arg0: i32) -> (i32, i32) {
    %c0_i32 = arith.constant 0 : i32
    %c0_i32_0 = arith.constant 0 : i32
    return %arg0, %c0_i32 : i32, i32
  }
  func.func @transform_1(%arg0: i32) -> (i32, i32) {
    %c0_i32 = arith.constant 0 : i32
    %c0_i32_0 = arith.constant 0 : i32
    return %arg0, %c0_i32 : i32, i32
  }
  func.func @transform_2(%arg0: i32) -> (i32, i32) {
    %c0_i32 = arith.constant 0 : i32
    %c0_i32_0 = arith.constant 0 : i32
    return %arg0, %c0_i32 : i32, i32
  }
}

</mosaic_0001>

<llo_original>
// kernel: tpu_custom_call.1
$region0: #{tpu_custom_call.1}
  #allocation0 [shape = 'u32[]', space=smem, size = 0x4, offset = 0x4, fixed_abs, tag = 'smem constant byte address 0x4 - core index']
  #allocation1 [shape = 'u32[144,128]{1,0:T(1,128)}', space=vmem, size = 0x12000, scoped, tag = 'internal scratch']
  %s0 = inlined_call_operand.hbm [shape: f32[8,256], index: 0, kind: input, shape index: {}]
  %s1 = inlined_call_operand.hbm [shape: f32[8,256], index: 1, kind: input, shape index: {}]
  %s2 = inlined_call_operand.hbm [shape: f32[8,256], index: 2, kind: output, shape index: {}]
  %s3 = sld [smem:[#allocation0]]
  $region26: #{tpu_custom_call.1} parent=0
    _
  %s5 = ssub.s32 1, %s3
  %s6 = scalar_select 0, %s5, %s3
  $region1: #{tpu_custom_call.1} parent=0
    #allocation2 [shape = 'u8[8192]{0}', space=vmem, size = 0x2000, scoped, tag = 'input window, operand 0, single buffered']
    #allocation3 [shape = 's32[1]{0}', space=sflag, size = 0x4, scoped, tag = 'scoped memory for tpu_custom_call.1']
    #allocation4 [shape = 's32[1]{0}', space=sflag, size = 0x4, scoped, tag = 'scoped memory for tpu_custom_call.1']
    #allocation5 [shape = 'u8[8192]{0}', space=vmem, size = 0x2000, scoped, tag = 'input window, operand 1, single buffered']
    #allocation6 [shape = 's32[1]{0}', space=sflag, size = 0x4, scoped, tag = 'scoped memory for tpu_custom_call.1']
    #allocation7 [shape = 'u8[8192]{0}', space=vmem, size = 0x2000, scoped, tag = 'output window, operand 0, single buffered']
    %7 = vsyncpa [#allocation3], 0
    %8 = vsyncpa [#allocation6], 0
    %9 = vsyncpa [#allocation4], 0
    // Predicated region
    $region2: #{tpu_custom_call.1} parent=1 // pred_check
      _
    $region3: #{tpu_custom_call.1} parent=1 // pred_check_branch
      %11 = sbr.rel (0) target = $region5
    $region4: #{tpu_custom_call.1} parent=1 // pred_region
      %s13 = ssub.s32 256, 256
      %14 = vsyncadd [#allocation3], %s13
      %s16 = sshll.u32 [#allocation2], 4
      %s17 = int_to_ptr.vmem [resolvable:$true] %s16
      %19 = dma.hbm_to_vmem [thread:$0]  %s0, 256, %s17, [#allocation3]
    $region5: #{tpu_custom_call.1} parent=1 // pred_fallthru
      _
    // Predicated region
    $region6: #{tpu_custom_call.1} parent=1 // pred_check
      _
    $region7: #{tpu_custom_call.1} parent=1 // pred_check_branch
      %21 = sbr.rel (0) target = $region9
    $region8: #{tpu_custom_call.1} parent=1 // pred_region
      %s23 = ssub.s32 256, 256
      %24 = vsyncadd [#allocation6], %s23
      %s26 = sshll.u32 [#allocation5], 4
      %s27 = int_to_ptr.vmem [resolvable:$true] %s26
      %29 = dma.hbm_to_vmem [thread:$0]  %s1, 256, %s27, [#allocation6]
    $region9: #{tpu_custom_call.1} parent=1 // pred_fallthru
      _
    // Predicated region
    $region10: #{tpu_custom_call.1} parent=1 // pred_check
      _
    $region11: #{tpu_custom_call.1} parent=1 // pred_check_branch
      %31 = sbr.rel (0) target = $region13
    $region12: #{tpu_custom_call.1} parent=1 // pred_region
      %32 = dma.done [#allocation3], 256
    $region13: #{tpu_custom_call.1} parent=1 // pred_fallthru
      _
    // Predicated region
    $region14: #{tpu_custom_call.1} parent=1 // pred_check
      _
    $region15: #{tpu_custom_call.1} parent=1 // pred_check_branch
      %34 = sbr.rel (0) target = $region17
    $region16: #{tpu_custom_call.1} parent=1 // pred_region
      %35 = dma.done [#allocation6], 256
    $region17: #{tpu_custom_call.1} parent=1 // pred_fallthru
      _
    %s36 = smul.u32 0, 2
    %s37 = smul.addr %s36, 8
    %s38 = scalar_lea.vmem [#allocation2], %s37
    %v39 = vld [vmem:[%s38] sm:$0xff]
    %v40 = vld [vmem:[%s38 + $0x8] sm:$0xff]
    %s41 = smul.addr %s36, 8
    %s42 = scalar_lea.vmem [#allocation5], %s41
    %v43 = vld [vmem:[%s42] sm:$0xff]
    %v44 = vld [vmem:[%s42 + $0x8] sm:$0xff]
    %v45 = vsub.f32 %v39, %v43
    %v46 = vsub.f32 %v40, %v44
    %v47 = vmul.f32 %v45, %v45
    %v48 = vmul.f32 %v46, %v46
    %v49 = vadd.f32 %v47, 0.0
    %v50 = vadd.f32 %v48, 0.0
    %51 = vst [vmem:[#allocation7] sm:$0xff] %v49
    %52 = vst [vmem:[#allocation7 + $0x8] sm:$0xff] %v50
    // Predicated region
    $region18: #{tpu_custom_call.1} parent=1 // pred_check
      _
    $region19: #{tpu_custom_call.1} parent=1 // pred_check_branch
      %54 = sbr.rel (0) target = $region21
    $region20: #{tpu_custom_call.1} parent=1 // pred_region
      %s56 = ssub.s32 256, 256
      %57 = vsyncadd [#allocation4], %s56
      %s59 = sshll.u32 [#allocation7], 4
      %s60 = int_to_ptr.vmem [resolvable:$true] %s59
      %62 = dma.vmem_to_hbm [thread:$0]  %s60, 256, %s2, [#allocation4]
    $region21: #{tpu_custom_call.1} parent=1 // pred_fallthru
      _
    // Predicated region
    $region22: #{tpu_custom_call.1} parent=1 // pred_check
      _
    $region23: #{tpu_custom_call.1} parent=1 // pred_check_branch
      %64 = sbr.rel (0) target = $region25
    $region24: #{tpu_custom_call.1} parent=1 // pred_region
      %65 = dma.done [#allocation4], 256
    $region25: #{tpu_custom_call.1} parent=1 // pred_fallthru
      _
    %66 = vsyncpa [#allocation3], 1
    %67 = vsyncpa [#allocation6], 1
    %68 = vsyncpa [#allocation4], 1

</llo_original>
